<compile_context>
chip_gen: v7x
topology: tpu7x:2x2x1
jax: 0.10.0
libtpu: 0.0.40
codegen_flags: <defaults>
</compile_context>

<pallas_src>
import functools

import jax
import jax.numpy as jnp
import numpy as np
from jax.experimental import pallas as pl
from jax.experimental.pallas import tpu as pltpu


def exu_kernel(x_ref, bias_ref, w_ref, o_ref, *, n):
    x = x_ref[...].astype(jnp.float32)      # (tile_b, 1)
    b = bias_ref[...].astype(jnp.float32)   # (1, 1)
    w = w_ref[...].astype(jnp.float32)      # (1, tile_o)
    # torch.mul broadcast (fin == 1): (tile_b, 1) * (1, tile_o) -> (tile_b, tile_o)
    out = (x - b) * jnp.exp(w)
    out = jnp.clip(out, 0.0, n)             # clip enforces the relu lower bound too
    o_ref[...] = out.astype(o_ref.dtype)


def exu_forward(x, weights, bias, n=1, tile_b=512, tile_o=1024, out_dtype=None):
    B, fin = x.shape
    fin_w, fout = weights.shape
    assert fin_w == fin and bias.shape == (fin,)
    # torch.mul broadcast semantics are only shape-consistent for in_features == 1.
    assert fin == 1, "ExU broadcast-mul forward requires in_features == 1"
    out_dtype = x.dtype if out_dtype is None else out_dtype

    # Clamp tiles to the problem; keep (8, 128)-aligned when they don't cover a full dim.
    tile_b = min(tile_b, B)
    tile_o = min(tile_o, fout)
    if tile_b < B:
        tile_b = max(8, (tile_b // 8) * 8)
    if tile_o < fout:
        tile_o = max(128, (tile_o // 128) * 128)

    grid = (pl.cdiv(B, tile_b), pl.cdiv(fout, tile_o))  # ragged edges handled by Pallas
    bias2d = bias.reshape(1, fin)
    kernel = functools.partial(exu_kernel, n=float(n))

    return pl.pallas_call(
        kernel,
        out_shape=jax.ShapeDtypeStruct((B, fout), out_dtype),
        grid=grid,
        in_specs=[
            pl.BlockSpec((tile_b, fin), lambda i, j: (i, 0)),   # x: batch-tiled
            pl.BlockSpec((1, fin), lambda i, j: (0, 0)),        # bias: resident scalar
            pl.BlockSpec((fin, tile_o), lambda i, j: (0, j)),   # weights: tiny per-j tile
        ],
        out_specs=pl.BlockSpec((tile_b, tile_o), lambda i, j: (i, j)),
        compiler_params=pltpu.CompilerParams(
            dimension_semantics=("parallel", "parallel")),
    )(x, bias2d, weights)


def exu_reference(x, weights, bias, n=1):
    out = (x.astype(jnp.float32) - bias[None, :].astype(jnp.float32)) * jnp.exp(
        weights.astype(jnp.float32))
    out = jnp.maximum(out, 0.0)
    return jnp.clip(out, 0.0, float(n)).astype(x.dtype)


if __name__ == "__main__":
    key = jax.random.PRNGKey(0)
    kw, kb, kx = jax.random.split(key, 3)

    # Canonical ExU usage: scalar feature per feature-net.
    IN_F, OUT_F, BATCH = 1, 256, 8
    # Deterministic stand-ins for trunc_normal_(mean=4.0, std=0.5) / trunc_normal_(std=0.5)
    weights = 4.0 + 0.5 * jax.random.truncated_normal(kw, -2.0, 2.0, (IN_F, OUT_F), jnp.float32)
    bias = 0.5 * jax.random.truncated_normal(kb, -2.0, 2.0, (IN_F,), jnp.float32)
    x = jax.random.normal(kx, (BATCH, IN_F), jnp.float32)

    out = jax.block_until_ready(exu_forward(x, weights, bias, n=1))
    np.testing.assert_allclose(np.asarray(out),
                               np.asarray(exu_reference(x, weights, bias, n=1)),
                               rtol=1e-6, atol=1e-6)

    # Small case exercising the 2-D (batch x out_features) tiled grid.
    B2, F2 = 16, 512
    kw2, kx2 = jax.random.split(kw)
    w2 = 4.0 + 0.5 * jax.random.truncated_normal(kw2, -2.0, 2.0, (1, F2), jnp.float32)
    x2 = jax.random.normal(kx2, (B2, 1), jnp.float32)
    out2 = jax.block_until_ready(exu_forward(x2, w2, bias, n=1, tile_b=8, tile_o=128))
    np.testing.assert_allclose(np.asarray(out2),
                               np.asarray(exu_reference(x2, w2, bias, n=1)),
                               rtol=1e-6, atol=1e-6)

    # Ragged case: tile sizes do not divide the array — exercises Pallas edge-block clipping.
    B3, F3 = 37, 300
    kw3, kx3 = jax.random.split(kb)
    w3 = 4.0 + 0.5 * jax.random.truncated_normal(kw3, -2.0, 2.0, (1, F3), jnp.float32)
    x3 = jax.random.normal(kx3, (B3, 1), jnp.float32)
    out3 = jax.block_until_ready(exu_forward(x3, w3, bias, n=1, tile_b=8, tile_o=128))
    np.testing.assert_allclose(np.asarray(out3),
                               np.asarray(exu_reference(x3, w3, bias, n=1)),
                               rtol=1e-6, atol=1e-6)

    print("KERNEL_OK")
</pallas_src>

<mosaic_0001>
module attributes {stable_mosaic.version = 11 : i64} {
  func.func @exu_kernel(%arg0: i32, %arg1: i32, %arg2: memref<8x1xf32, #tpu.memory_space<vmem>>, %arg3: memref<1x1xf32, #tpu.memory_space<vmem>>, %arg4: memref<1x256xf32, #tpu.memory_space<vmem>>, %arg5: memref<8x256xf32, #tpu.memory_space<vmem>>) attributes {dimension_semantics = [#tpu.dimension_semantics<parallel>, #tpu.dimension_semantics<parallel>], iteration_bounds = array<i64: 1, 1>, scalar_prefetch = 0 : i64, scratch_operands = 0 : i64, tpu.core_type = #tpu.core_type<tc>, window_params = [{transform_indices = @transform_0, window_bounds = array<i64: 8, 1>}, {pipeline_mode = #tpu.pipeline_mode<synchronous>, transform_indices = @transform_1, window_bounds = array<i64: 1, 1>}, {transform_indices = @transform_2, window_bounds = array<i64: 1, 256>}, {transform_indices = @transform_3, window_bounds = array<i64: 8, 256>}]} {
    %c0 = arith.constant 0 : index
    %c0_0 = arith.constant 0 : index
    %0 = vector.load %arg2[%c0, %c0_0] : memref<8x1xf32, #tpu.memory_space<vmem>>, vector<8x1xf32>
    %c0_1 = arith.constant 0 : index
    %c0_2 = arith.constant 0 : index
    %1 = vector.load %arg3[%c0_1, %c0_2] : memref<1x1xf32, #tpu.memory_space<vmem>>, vector<1x1xf32>
    %c0_3 = arith.constant 0 : index
    %c0_4 = arith.constant 0 : index
    %2 = vector.load %arg4[%c0_3, %c0_4] : memref<1x256xf32, #tpu.memory_space<vmem>>, vector<1x256xf32>
    %3 = vector.broadcast %1 : vector<1x1xf32> to vector<8x1xf32>
    %4 = arith.subf %0, %3 : vector<8x1xf32>
    %5 = math.exp %2 : vector<1x256xf32>
    %6 = vector.broadcast %4 : vector<8x1xf32> to vector<8x256xf32>
    %7 = vector.broadcast %5 : vector<1x256xf32> to vector<8x256xf32>
    %8 = arith.mulf %6, %7 : vector<8x256xf32>
    %cst = arith.constant 0.000000e+00 : f32
    %cst_5 = arith.constant 1.000000e+00 : f32
    %9 = vector.broadcast %cst : f32 to vector<8x256xf32>
    %10 = arith.maximumf %9, %8 : vector<8x256xf32>
    %11 = vector.broadcast %cst_5 : f32 to vector<8x256xf32>
    %12 = arith.minimumf %11, %10 : vector<8x256xf32>
    %c0_6 = arith.constant 0 : index
    %c0_7 = arith.constant 0 : index
    %13 = vector.load %arg5[%c0_6, %c0_7] : memref<8x256xf32, #tpu.memory_space<vmem>>, vector<8x256xf32>
    tpu.vector_store %arg5[%c0_6, %c0_7], %12 {strides = array<i32>} : memref<8x256xf32, #tpu.memory_space<vmem>>, vector<8x256xf32>,
    return
  }
  func.func @transform_0(%arg0: i32, %arg1: i32) -> (i32, i32) {
    %c0_i32 = arith.constant 0 : i32
    %c0_i32_0 = arith.constant 0 : i32
    return %arg0, %c0_i32 : i32, i32
  }
  func.func @transform_1(%arg0: i32, %arg1: i32) -> (i32, i32) {
    %c0_i32 = arith.constant 0 : i32
    %c0_i32_0 = arith.constant 0 : i32
    %c0_i32_1 = arith.constant 0 : i32
    return %c0_i32, %c0_i32_0 : i32, i32
  }
  func.func @transform_2(%arg0: i32, %arg1: i32) -> (i32, i32) {
    %c0_i32 = arith.constant 0 : i32
    %c0_i32_0 = arith.constant 0 : i32
    return %c0_i32, %arg1 : i32, i32
  }
  func.func @transform_3(%arg0: i32, %arg1: i32) -> (i32, i32) {
    %c0_i32 = arith.constant 0 : i32
    return %arg0, %arg1 : i32, i32
  }
}

</mosaic_0001>

<llo_original>
// kernel: tpu_custom_call.1
$region0: #{tpu_custom_call.1}
  #allocation0 [shape = 'u32[]', space=smem, size = 0x4, offset = 0x4, fixed_abs, tag = 'smem constant byte address 0x4 - core index']
  #allocation1 [shape = 'u32[144,128]{1,0:T(1,128)}', space=vmem, size = 0x12000, scoped, tag = 'internal scratch']
  #allocation2 [shape = 'f32[1,1]{1,0:T(1,128)S(1)}', space=vmem, size = 0x200, scoped, tag = 'scoped memory for tpu_custom_call.1']
  %s0 = inlined_call_operand.vmem [shape: f32[8,1], index: 0, kind: input, shape index: {}]
  %s1 = inlined_call_operand.<no memory space> [shape: f32[1,1], index: 1, kind: input, shape index: {}]
  %s2 = inlined_call_operand.vmem [shape: f32[1,256], index: 2, kind: input, shape index: {}]
  %s3 = inlined_call_operand.hbm [shape: f32[8,256], index: 3, kind: output, shape index: {}]
  %s4 = sld [smem:[#allocation0]]
  $region22: #{tpu_custom_call.1} parent=0
    _
  %s6 = ssub.s32 1, %s4
  %s7 = scalar_select 0, %s6, %s4
  %v8 = vstv %s1
  %9 = vst [vmem:[#allocation2] sm:$0x1] %v8
  $region1: #{tpu_custom_call.1} parent=0
    #allocation3 [shape = 'u8[8192]{0}', space=vmem, size = 0x2000, scoped, tag = 'output window, operand 0, single buffered']
    #allocation4 [shape = 's32[1]{0}', space=sflag, size = 0x4, scoped, tag = 'scoped memory for tpu_custom_call.1']
    %10 = vsyncpa [#allocation4], 0
    // Predicated region
    $region2: #{tpu_custom_call.1} parent=1 // pred_check
      _
    $region3: #{tpu_custom_call.1} parent=1 // pred_check_branch
      %12 = sbr.rel (0) target = $region5
    $region4: #{tpu_custom_call.1} parent=1 // pred_region
      _
    $region5: #{tpu_custom_call.1} parent=1 // pred_fallthru
      _
    // Predicated region
    $region6: #{tpu_custom_call.1} parent=1 // pred_check
      _
    $region7: #{tpu_custom_call.1} parent=1 // pred_check_branch
      %14 = sbr.rel (0) target = $region9
    $region8: #{tpu_custom_call.1} parent=1 // pred_region
      _
    $region9: #{tpu_custom_call.1} parent=1 // pred_fallthru
      _
    // Predicated region
    $region10: #{tpu_custom_call.1} parent=1 // pred_check
      _
    $region11: #{tpu_custom_call.1} parent=1 // pred_check_branch
      %16 = sbr.rel (0) target = $region13
    $region12: #{tpu_custom_call.1} parent=1 // pred_region
      _
    $region13: #{tpu_custom_call.1} parent=1 // pred_fallthru
      _
    %v17 = vld [vmem:[%s0] sm:$0xff]
    %v18 = vld [vmem:[#allocation2] sm:$0x1]
    %v19 = vld [vmem:[%s2] sm:$0x3]
    %v21 = vlaneseq
    %v22 = vshrl.u32 %v21, 7
    %v23 = vsub.s32 0, %v22
    %v24 = vrot.slane %v18, %v23
    %v26 = vsub.f32 %v17, %v24
    %v27 = vmul.f32 %v19, 1.442695
    %v28 = vpow.pop %v27
    %30 = vset.pattern.permute.xlu0 0
    %31 = vperm.xlu0 %30, %v26
    %v32 = vpop.permute.xlu0 %31
    %v35 = vlaneseq
    %v36 = vshrl.u32 %v35, 7
    %v37 = vsub.s32 0, %v36
    %v38 = vrot.slane %v28, %v37
    %v39 = vlaneseq
    %v40 = vshrl.u32 %v39, 7
    %v41 = vsub.s32 1, %v40
    %v42 = vrot.slane %v28, %v41
    %v45 = vmul.f32 %v32, %v38
    %v46 = vmul.f32 %v32, %v42
    %v47 = vmax.f32 %v45, 0.0
    %v48 = vmax.f32 %v46, 0.0
    %v49 = vmin.f32 %v47, 1.0
    %v50 = vmin.f32 %v48, 1.0
    %51 = vst [vmem:[#allocation3] sm:$0xff] %v49
    %52 = vst [vmem:[#allocation3 + $0x8] sm:$0xff] %v50
    // Predicated region
    $region14: #{tpu_custom_call.1} parent=1 // pred_check
      _
    $region15: #{tpu_custom_call.1} parent=1 // pred_check_branch
      %54 = sbr.rel (0) target = $region17
    $region16: #{tpu_custom_call.1} parent=1 // pred_region
      %s56 = ssub.s32 256, 256
      %57 = vsyncadd [#allocation4], %s56
      %s59 = sshll.u32 [#allocation3], 4
      %s60 = int_to_ptr.vmem [resolvable:$true] %s59
      %62 = dma.vmem_to_hbm [thread:$0]  %s60, 256, %s3, [#allocation4]
    $region17: #{tpu_custom_call.1} parent=1 // pred_fallthru
      _
    // Predicated region
    $region18: #{tpu_custom_call.1} parent=1 // pred_check
      _
    $region19: #{tpu_custom_call.1} parent=1 // pred_check_branch
      %64 = sbr.rel (0) target = $region21
    $region20: #{tpu_custom_call.1} parent=1 // pred_region
      %65 = dma.done [#allocation4], 256
    $region21: #{tpu_custom_call.1} parent=1 // pred_fallthru
      _
    %66 = vsyncpa [#allocation4], 1

</llo_original>
